<compile_context>
chip_gen: v7x
topology: tpu7x:2x2x1
jax: 0.10.0
libtpu: 0.0.40
codegen_flags: <defaults>
</compile_context>

<pallas_src>
import math
import functools

import jax
import jax.numpy as jnp
from jax.experimental import pallas as pl
from jax.experimental.pallas import tpu as pltpu


def _attention_kernel(lens_ref, key_ref, value_ref, query_ref, out_ref, attn_ref,
                      *, scale):
    k = key_ref[...]          # (Bt, S, K)
    v = value_ref[...]        # (Bt, S, V)
    q = query_ref[...]        # (Bt, K)
    lens = lens_ref[...]      # (Bt, 1) int32

    Bt, S, K = k.shape

    # Fold 1/sqrt(K) into the query (K elems/row) instead of scaling Bt*S scores.
    qs = q.astype(jnp.float32) * jnp.float32(scale)

    # energy[b, s] = sum_k key[b, s, k] * q[b, k]   (VPU multiply + lane reduce)
    scores = jnp.sum(k.astype(jnp.float32) * qs[:, None, :], axis=-1)      # (Bt, S)

    # Length mask: positions >= lens[b] get -1e9 (matches masked_fill_ in the module).
    pos = jax.lax.broadcasted_iota(jnp.int32, (Bt, S), 1)
    scores = jnp.where(pos >= lens, jnp.float32(-1000000000.0), scores)

    # Softmax over the lane axis (sequence).
    m = jnp.max(scores, axis=-1, keepdims=True)
    e = jnp.exp(scores - m)
    denom = jnp.sum(e, axis=-1, keepdims=True)
    attn = e * pl.reciprocal(denom, approx=False)                           # (Bt, S)

    # context[b, v] = sum_s attn[b, s] * value[b, s, v]   (sublane reduce over S)
    ctx = jnp.sum(attn[:, :, None] * v.astype(jnp.float32), axis=1)         # (Bt, V)

    out_ref[...] = ctx.astype(out_ref.dtype)
    attn_ref[...] = attn.astype(attn_ref.dtype)


def _pick_block_batch(B, S, K, V, budget_bytes=16 << 20):
    """Largest batch block Bt that divides B and keeps the double-buffered
    key/value/query/output tiles under a VMEM budget safe for v7x (64 MiB)."""
    per_row_bytes = 4 * (S * K + S * V + K + V + S + 1)   # f32 bytes per batch row
    cap = max(1, budget_bytes // (2 * per_row_bytes))     # x2 for double-buffering
    best = 1
    for bt in range(1, min(B, 256) + 1):
        if B % bt == 0 and bt <= cap:
            best = bt
    return best


@jax.jit
def attention(key, value, query, lens):
    """key: (B,S,K) f32, value: (B,S,V) f32, query: (B,K) f32, lens: (B,) int."""
    B, S, K = key.shape
    V = value.shape[2]
    Bt = _pick_block_batch(B, S, K, V)
    lens2d = lens.astype(jnp.int32).reshape(B, 1)

    kernel = functools.partial(_attention_kernel, scale=1.0 / math.sqrt(K))

    grid_spec = pltpu.PrefetchScalarGridSpec(
        num_scalar_prefetch=0,
        grid=(B // Bt,),
        in_specs=[
            pl.BlockSpec((Bt, 1), lambda b: (b, 0)),        # lens  (VMEM vector)
            pl.BlockSpec((Bt, S, K), lambda b: (b, 0, 0)),  # key
            pl.BlockSpec((Bt, S, V), lambda b: (b, 0, 0)),  # value
            pl.BlockSpec((Bt, K), lambda b: (b, 0)),        # query
        ],
        out_specs=[
            pl.BlockSpec((Bt, V), lambda b: (b, 0)),        # context
            pl.BlockSpec((Bt, S), lambda b: (b, 0)),        # attention (lane-dense)
        ],
    )

    out, attn = pl.pallas_call(
        kernel,
        grid_spec=grid_spec,
        out_shape=(
            jax.ShapeDtypeStruct((B, V), jnp.float32),
            jax.ShapeDtypeStruct((B, S), jnp.float32),
        ),
        compiler_params=pltpu.CompilerParams(
            dimension_semantics=("parallel",),          # batch rows are independent
            vmem_limit_bytes=64 * 1024 * 1024,
        ),
    )(lens2d, key, value, query)
    return out, attn


def _reference(key, value, query, lens):
    K = key.shape[2]
    energy = jnp.einsum("bsk,bk->bs", key, query) / math.sqrt(K)
    mask = jnp.arange(key.shape[1])[None, :] >= lens[:, None]
    energy = jnp.where(mask, -1000000000.0, energy)
    attn = jax.nn.softmax(energy, axis=1)
    out = jnp.einsum("bs,bsv->bv", attn, value)
    return out, attn


if __name__ == "__main__":
    B, S, K, V = 8, 8, 32, 32
    rng = jax.random.PRNGKey(0)
    k_key, k_val, k_qry = jax.random.split(rng, 3)

    key = jax.random.normal(k_key, (B, S, K), dtype=jnp.float32)
    value = jax.random.normal(k_val, (B, S, V), dtype=jnp.float32)
    query = jax.random.normal(k_qry, (B, K), dtype=jnp.float32)
    lens = jnp.array([8, 5, 3, 8, 1, 6, 7, 2], dtype=jnp.int32)

    out, attn = attention(key, value, query, lens)
    jax.block_until_ready((out, attn))

    ref_out, ref_attn = _reference(key, value, query, lens)
    assert jnp.allclose(out, ref_out, atol=1e-5, rtol=1e-5)
    assert jnp.allclose(attn, ref_attn, atol=1e-5, rtol=1e-5)

    print("KERNEL_OK")
</pallas_src>

<mosaic_0001>
module attributes {stable_mosaic.version = 11 : i64} {
  func.func @_attention_kernel(%arg0: i32, %arg1: memref<8x1xi32, #tpu.memory_space<vmem>>, %arg2: memref<8x8x32xf32, #tpu.memory_space<vmem>>, %arg3: memref<8x8x32xf32, #tpu.memory_space<vmem>>, %arg4: memref<8x32xf32, #tpu.memory_space<vmem>>, %arg5: memref<8x32xf32, #tpu.memory_space<vmem>>, %arg6: memref<8x8xf32, #tpu.memory_space<vmem>>) attributes {dimension_semantics = [#tpu.dimension_semantics<parallel>], iteration_bounds = array<i64: 1>, scalar_prefetch = 0 : i64, scratch_operands = 0 : i64, tpu.core_type = #tpu.core_type<tc>, window_params = [{transform_indices = @transform_0, window_bounds = array<i64: 8, 1>}, {transform_indices = @transform_1, window_bounds = array<i64: 8, 8, 32>}, {transform_indices = @transform_2, window_bounds = array<i64: 8, 8, 32>}, {transform_indices = @transform_3, window_bounds = array<i64: 8, 32>}, {transform_indices = @transform_4, window_bounds = array<i64: 8, 32>}, {transform_indices = @transform_5, window_bounds = array<i64: 8, 8>}]} {
    %c0 = arith.constant 0 : index
    %c0_0 = arith.constant 0 : index
    %c0_1 = arith.constant 0 : index
    %0 = vector.load %arg2[%c0, %c0_0, %c0_1] : memref<8x8x32xf32, #tpu.memory_space<vmem>>, vector<8x8x32xf32>
    %c0_2 = arith.constant 0 : index
    %c0_3 = arith.constant 0 : index
    %c0_4 = arith.constant 0 : index
    %1 = vector.load %arg3[%c0_2, %c0_3, %c0_4] : memref<8x8x32xf32, #tpu.memory_space<vmem>>, vector<8x8x32xf32>
    %c0_5 = arith.constant 0 : index
    %c0_6 = arith.constant 0 : index
    %2 = vector.load %arg4[%c0_5, %c0_6] : memref<8x32xf32, #tpu.memory_space<vmem>>, vector<8x32xf32>
    %c0_7 = arith.constant 0 : index
    %c0_8 = arith.constant 0 : index
    %3 = vector.load %arg1[%c0_7, %c0_8] : memref<8x1xi32, #tpu.memory_space<vmem>>, vector<8x1xi32>
    %cst = arith.constant 0.176776692 : f32
    %4 = vector.broadcast %cst : f32 to vector<8x32xf32>
    %5 = arith.mulf %2, %4 : vector<8x32xf32>
    %6 = vector.shape_cast %5 : vector<8x32xf32> to vector<8x1x32xf32>
    %7 = vector.broadcast %6 : vector<8x1x32xf32> to vector<8x8x32xf32>
    %8 = arith.mulf %0, %7 : vector<8x8x32xf32>
    %cst_9 = arith.constant dense<0.000000e+00> : vector<8x8xf32>
    %9 = vector.multi_reduction <add>, %8, %cst_9 [2] : vector<8x8x32xf32> to vector<8x8xf32>
    %10 = tpu.iota {dimensions = array<i32: 1>} : vector<8x8xi32>
    %11 = vector.broadcast %3 : vector<8x1xi32> to vector<8x8xi32>
    %12 = arith.cmpi sge, %10, %11 : vector<8x8xi32>
    %cst_10 = arith.constant -1.000000e+09 : f32
    %13 = vector.broadcast %cst_10 : f32 to vector<8x8xf32>
    %14 = arith.select %12, %13, %9 : vector<8x8xi1>, vector<8x8xf32>
    %cst_11 = arith.constant dense<0xFF800000> : vector<8xf32>
    %15 = vector.multi_reduction <maximumf>, %14, %cst_11 [1] : vector<8x8xf32> to vector<8xf32>
    %16 = vector.shape_cast %15 : vector<8xf32> to vector<8x1xf32>
    %17 = vector.broadcast %16 : vector<8x1xf32> to vector<8x8xf32>
    %18 = arith.subf %14, %17 : vector<8x8xf32>
    %19 = math.exp %18 : vector<8x8xf32>
    %cst_12 = arith.constant dense<0.000000e+00> : vector<8xf32>
    %20 = vector.multi_reduction <add>, %19, %cst_12 [1] : vector<8x8xf32> to vector<8xf32>
    %21 = vector.shape_cast %20 : vector<8xf32> to vector<8x1xf32>
    %22 = tpu.reciprocal %21 : vector<8x1xf32> -> vector<8x1xf32>
    %23 = vector.broadcast %22 : vector<8x1xf32> to vector<8x8xf32>
    %24 = arith.mulf %19, %23 : vector<8x8xf32>
    %25 = vector.shape_cast %24 : vector<8x8xf32> to vector<8x8x1xf32>
    %26 = vector.broadcast %25 : vector<8x8x1xf32> to vector<8x8x32xf32>
    %27 = arith.mulf %26, %1 : vector<8x8x32xf32>
    %cst_13 = arith.constant dense<0.000000e+00> : vector<8x32xf32>
    %28 = vector.multi_reduction <add>, %27, %cst_13 [1] : vector<8x8x32xf32> to vector<8x32xf32>
    %c0_14 = arith.constant 0 : index
    %c0_15 = arith.constant 0 : index
    %29 = vector.load %arg5[%c0_14, %c0_15] : memref<8x32xf32, #tpu.memory_space<vmem>>, vector<8x32xf32>
    tpu.vector_store %arg5[%c0_14, %c0_15], %28 {strides = array<i32>} : memref<8x32xf32, #tpu.memory_space<vmem>>, vector<8x32xf32>,
    %c0_16 = arith.constant 0 : index
    %c0_17 = arith.constant 0 : index
    %30 = vector.load %arg6[%c0_16, %c0_17] : memref<8x8xf32, #tpu.memory_space<vmem>>, vector<8x8xf32>
    tpu.vector_store %arg6[%c0_16, %c0_17], %24 {strides = array<i32>} : memref<8x8xf32, #tpu.memory_space<vmem>>, vector<8x8xf32>,
    return
  }
  func.func @transform_0(%arg0: i32) -> (i32, i32) {
    %c0_i32 = arith.constant 0 : i32
    %c0_i32_0 = arith.constant 0 : i32
    return %arg0, %c0_i32 : i32, i32
  }
  func.func @transform_1(%arg0: i32) -> (i32, i32, i32) {
    %c0_i32 = arith.constant 0 : i32
    %c0_i32_0 = arith.constant 0 : i32
    %c0_i32_1 = arith.constant 0 : i32
    return %arg0, %c0_i32, %c0_i32_0 : i32, i32, i32
  }
  func.func @transform_2(%arg0: i32) -> (i32, i32, i32) {
    %c0_i32 = arith.constant 0 : i32
    %c0_i32_0 = arith.constant 0 : i32
    %c0_i32_1 = arith.constant 0 : i32
    return %arg0, %c0_i32, %c0_i32_0 : i32, i32, i32
  }
  func.func @transform_3(%arg0: i32) -> (i32, i32) {
    %c0_i32 = arith.constant 0 : i32
    %c0_i32_0 = arith.constant 0 : i32
    return %arg0, %c0_i32 : i32, i32
  }
  func.func @transform_4(%arg0: i32) -> (i32, i32) {
    %c0_i32 = arith.constant 0 : i32
    %c0_i32_0 = arith.constant 0 : i32
    return %arg0, %c0_i32 : i32, i32
  }
  func.func @transform_5(%arg0: i32) -> (i32, i32) {
    %c0_i32 = arith.constant 0 : i32
    %c0_i32_0 = arith.constant 0 : i32
    return %arg0, %c0_i32 : i32, i32
  }
}

</mosaic_0001>

<llo_original>
// kernel: attention.1
$region0: #{attention.1}
  #allocation0 [shape = 'u32[]', space=smem, size = 0x4, offset = 0x4, fixed_abs, tag = 'smem constant byte address 0x4 - core index']
  #allocation1 [shape = 'u32[144,128]{1,0:T(1,128)}', space=vmem, size = 0x12000, scoped, tag = 'internal scratch']
  %s0 = inlined_call_operand.hbm [shape: s32[8,1], index: 0, kind: input, shape index: {}]
  %s1 = inlined_call_operand.hbm [shape: f32[8,8,32], index: 1, kind: input, shape index: {}]
  %s2 = inlined_call_operand.hbm [shape: f32[8,8,32], index: 2, kind: input, shape index: {}]
  %s3 = inlined_call_operand.hbm [shape: f32[8,32], index: 3, kind: input, shape index: {}]
  %s4 = inlined_call_operand.hbm [shape: f32[8,32], index: 4, kind: output, shape index: {0}]
  %s5 = inlined_call_operand.hbm [shape: f32[8,8], index: 5, kind: output, shape index: {1}]
  %6 = xla_tuple %s4, %s5
  %s7 = sld [smem:[#allocation0]]
  $region50: #{attention.1} parent=0
    _
  %s9 = ssub.s32 1, %s7
  %s10 = scalar_select 0, %s9, %s7
  $region1: #{attention.1} parent=0
    #allocation2 [shape = 'u8[4096]{0}', space=vmem, size = 0x1000, scoped, tag = 'input window, operand 0, single buffered']
    #allocation3 [shape = 's32[1]{0}', space=sflag, size = 0x4, scoped, tag = 'scoped memory for attention.1']
    #allocation4 [shape = 's32[1]{0}', space=sflag, size = 0x4, scoped, tag = 'scoped memory for attention.1']
    #allocation5 [shape = 'u8[32768]{0}', space=vmem, size = 0x8000, scoped, tag = 'input window, operand 1, single buffered']
    #allocation6 [shape = 's32[1]{0}', space=sflag, size = 0x4, scoped, tag = 'scoped memory for attention.1']
    #allocation7 [shape = 'u8[32768]{0}', space=vmem, size = 0x8000, scoped, tag = 'input window, operand 2, single buffered']
    #allocation8 [shape = 'u8[4096]{0}', space=vmem, size = 0x1000, scoped, tag = 'input window, operand 3, single buffered']
    #allocation9 [shape = 's32[1]{0}', space=sflag, size = 0x4, scoped, tag = 'scoped memory for attention.1']
    #allocation10 [shape = 'u8[4096]{0}', space=vmem, size = 0x1000, scoped, tag = 'output window, operand 0, single buffered']
    #allocation11 [shape = 'u8[4096]{0}', space=vmem, size = 0x1000, scoped, tag = 'output window, operand 1, single buffered']
    #allocation12 [shape = 's32[1]{0}', space=sflag, size = 0x4, scoped, tag = 'scoped memory for attention.1']
    %11 = vsyncpa [#allocation3], 0
    %12 = vsyncpa [#allocation6], 0
    %13 = vsyncpa [#allocation9], 0
    %14 = vsyncpa [#allocation4], 0
    %15 = vsyncpa [#allocation12], 0
    // Predicated region
    $region2: #{attention.1} parent=1 // pred_check
      _
    $region3: #{attention.1} parent=1 // pred_check_branch
      %17 = sbr.rel (0) target = $region5
    $region4: #{attention.1} parent=1 // pred_region
      %s19 = ssub.s32 128, 128
      %20 = vsyncadd [#allocation3], %s19
      %s22 = sshll.u32 [#allocation2], 4
      %s23 = int_to_ptr.vmem [resolvable:$true] %s22
      %25 = dma.hbm_to_vmem [thread:$0]  %s0, 128, %s23, [#allocation3]
    $region5: #{attention.1} parent=1 // pred_fallthru
      _
    // Predicated region
    $region6: #{attention.1} parent=1 // pred_check
      _
    $region7: #{attention.1} parent=1 // pred_check_branch
      %27 = sbr.rel (0) target = $region9
    $region8: #{attention.1} parent=1 // pred_region
      %s29 = ssub.s32 1024, 1024
      %30 = vsyncadd [#allocation6], %s29
      %s31 = sshll.u32 [#allocation5], 4
      %s32 = int_to_ptr.vmem [resolvable:$true] %s31
      %37 = dma.hbm_to_vmem [thread:$0]  %s1, 1024, %s32, [#allocation6], 128, 128, 8
    $region9: #{attention.1} parent=1 // pred_fallthru
      _
    // Predicated region
    $region10: #{attention.1} parent=1 // pred_check
      _
    $region11: #{attention.1} parent=1 // pred_check_branch
      %39 = sbr.rel (0) target = $region13
    $region12: #{attention.1} parent=1 // pred_region
      %s41 = ssub.s32 1024, 1024
      %42 = vsyncadd [#allocation6], %s41
      %s43 = sshll.u32 [#allocation7], 4
      %s44 = int_to_ptr.vmem [resolvable:$true] %s43
      %49 = dma.hbm_to_vmem [thread:$0]  %s2, 1024, %s44, [#allocation6], 128, 128, 8
    $region13: #{attention.1} parent=1 // pred_fallthru
      _
    // Predicated region
    $region14: #{attention.1} parent=1 // pred_check
      _
    $region15: #{attention.1} parent=1 // pred_check_branch
      %51 = sbr.rel (0) target = $region17
    $region16: #{attention.1} parent=1 // pred_region
      %s53 = ssub.s32 128, 128
      %54 = vsyncadd [#allocation9], %s53
      %s56 = sshll.u32 [#allocation8], 4
      %s57 = int_to_ptr.vmem [resolvable:$true] %s56
      %59 = dma.hbm_to_vmem [thread:$0]  %s3, 128, %s57, [#allocation9]
    $region17: #{attention.1} parent=1 // pred_fallthru
      _
    // Predicated region
    $region18: #{attention.1} parent=1 // pred_check
      _
    $region19: #{attention.1} parent=1 // pred_check_branch
      %61 = sbr.rel (0) target = $region21
    $region20: #{attention.1} parent=1 // pred_region
      %62 = dma.done [#allocation3], 128
    $region21: #{attention.1} parent=1 // pred_fallthru
      _
    // Predicated region
    $region22: #{attention.1} parent=1 // pred_check
      _
    $region23: #{attention.1} parent=1 // pred_check_branch
      %64 = sbr.rel (0) target = $region25
    $region24: #{attention.1} parent=1 // pred_region
      %65 = dma.done [#allocation6], 1024
    $region25: #{attention.1} parent=1 // pred_fallthru
      _
    // Predicated region
    $region26: #{attention.1} parent=1 // pred_check
      _
    $region27: #{attention.1} parent=1 // pred_check_branch
      %67 = sbr.rel (0) target = $region29
    $region28: #{attention.1} parent=1 // pred_region
      %68 = dma.done [#allocation6], 1024
    $region29: #{attention.1} parent=1 // pred_fallthru
      _
    // Predicated region
    $region30: #{attention.1} parent=1 // pred_check
      _
    $region31: #{attention.1} parent=1 // pred_check_branch
      %70 = sbr.rel (0) target = $region33
    $region32: #{attention.1} parent=1 // pred_region
      %71 = dma.done [#allocation9], 128
    $region33: #{attention.1} parent=1 // pred_fallthru
      _
    %v72 = vld [vmem:[#allocation5] sm:$0xff]
    %v73 = vld [vmem:[#allocation5 + $0x8] sm:$0xff]
    %v74 = vld [vmem:[#allocation5 + $0x10] sm:$0xff]
    %v75 = vld [vmem:[#allocation5 + $0x18] sm:$0xff]
    %v76 = vld [vmem:[#allocation5 + $0x20] sm:$0xff]
    %v77 = vld [vmem:[#allocation5 + $0x28] sm:$0xff]
    %v78 = vld [vmem:[#allocation5 + $0x30] sm:$0xff]
    %v79 = vld [vmem:[#allocation5 + $0x38] sm:$0xff]
    %v80 = vld [vmem:[#allocation7] sm:$0xff]
    %v81 = vld [vmem:[#allocation7 + $0x8] sm:$0xff]
    %v82 = vld [vmem:[#allocation7 + $0x10] sm:$0xff]
    %v83 = vld [vmem:[#allocation7 + $0x18] sm:$0xff]
    %v84 = vld [vmem:[#allocation7 + $0x20] sm:$0xff]
    %v85 = vld [vmem:[#allocation7 + $0x28] sm:$0xff]
    %v86 = vld [vmem:[#allocation7 + $0x30] sm:$0xff]
    %v87 = vld [vmem:[#allocation7 + $0x38] sm:$0xff]
    %v88 = vld [vmem:[#allocation8] sm:$0xff]
    %v89 = vld [vmem:[#allocation2] sm:$0xff]
    %v90 = vmul.f32 %v88, 0.17677669
    %v92 = vcombine.high %v90, %v90
    %v94 = vunpack.c.l.s4 1966171168
    %v95 = vunpack.c.0.s8 %v94
    %v96 = vlaneseq
    %v97 = vshrl.u32 %v96, 7
    %v98 = vsub.s32 %v95, %v97
    %v99 = vrot.slane %v90, %v98
    %v101 = vunpack.c.l.s4 1966171168
    %v102 = vunpack.c.0.s8 %v101
    %v103 = vlaneseq
    %v104 = vshrl.u32 %v103, 7
    %v105 = vsub.s32 %v102, %v104
    %v106 = vrot.slane %v92, %v105
    %v107 = vcombine.high %v99, %v99
    %v108 = vcombine.high %v106, %v106
    %v110 = vunpack.c.l.s4 1966171168
    %v111 = vunpack.c.0.s8 %v110
    %v112 = vlaneseq
    %v113 = vshrl.u32 %v112, 7
    %v114 = vsub.s32 %v111, %v113
    %v115 = vrot.slane %v99, %v114
    %v117 = vunpack.c.l.s4 1966171168
    %v118 = vunpack.c.0.s8 %v117
    %v119 = vlaneseq
    %v120 = vshrl.u32 %v119, 7
    %v121 = vsub.s32 %v118, %v120
    %v122 = vrot.slane %v106, %v121
    %v124 = vunpack.c.l.s4 1966171168
    %v125 = vunpack.c.0.s8 %v124
    %v126 = vlaneseq
    %v127 = vshrl.u32 %v126, 7
    %v128 = vsub.s32 %v125, %v127
    %v129 = vrot.slane %v107, %v128
    %v131 = vunpack.c.l.s4 1966171168
    %v132 = vunpack.c.0.s8 %v131
    %v133 = vlaneseq
    %v134 = vshrl.u32 %v133, 7
    %v135 = vsub.s32 %v132, %v134
    %v136 = vrot.slane %v108, %v135
    %v137 = vcombine.high %v115, %v115
    %v138 = vcombine.high %v122, %v122
    %v139 = vcombine.high %v129, %v129
    %v140 = vcombine.high %v136, %v136
    %v141 = vlaneseq
    %v142 = vshrl.u32 %v141, 7
    %v143 = vsub.s32 0, %v142
    %v144 = vrot.slane %v115, %v143
    %v145 = vlaneseq
    %v146 = vshrl.u32 %v145, 7
    %v147 = vsub.s32 0, %v146
    %v148 = vrot.slane %v129, %v147
    %v149 = vlaneseq
    %v150 = vshrl.u32 %v149, 7
    %v151 = vsub.s32 0, %v150
    %v152 = vrot.slane %v137, %v151
    %v153 = vlaneseq
    %v154 = vshrl.u32 %v153, 7
    %v155 = vsub.s32 0, %v154
    %v156 = vrot.slane %v139, %v155
    %v157 = vlaneseq
    %v158 = vshrl.u32 %v157, 7
    %v159 = vsub.s32 0, %v158
    %v160 = vrot.slane %v122, %v159
    %v161 = vlaneseq
    %v162 = vshrl.u32 %v161, 7
    %v163 = vsub.s32 0, %v162
    %v164 = vrot.slane %v136, %v163
    %v165 = vlaneseq
    %v166 = vshrl.u32 %v165, 7
    %v167 = vsub.s32 0, %v166
    %v168 = vrot.slane %v138, %v167
    %v169 = vlaneseq
    %v170 = vshrl.u32 %v169, 7
    %v171 = vsub.s32 0, %v170
    %v172 = vrot.slane %v140, %v171
    %v181 = vmul.f32 %v72, %v144
    %v182 = vmul.f32 %v73, %v148
    %v183 = vmul.f32 %v74, %v152
    %v184 = vmul.f32 %v75, %v156
    %v185 = vmul.f32 %v76, %v160
    %v186 = vmul.f32 %v77, %v164
    %v187 = vmul.f32 %v78, %v168
    %v188 = vmul.f32 %v79, %v172
    %vm189 = vcmask 261120
    %v190 = vsel %vm189, %v181, 0.0
    %191 = vadd.xlane.f32.xlu0 %v190
    %v192 = vpop.xlane.xlu0 %191
    %v193 = vsel %vm189, %v182, 0.0
    %194 = vadd.xlane.f32.xlu0 %v193
    %v195 = vpop.xlane.xlu0 %194
    %v196 = vsel %vm189, %v183, 0.0
    %197 = vadd.xlane.f32.xlu0 %v196
    %v198 = vpop.xlane.xlu0 %197
    %v199 = vsel %vm189, %v184, 0.0
    %200 = vadd.xlane.f32.xlu0 %v199
    %v201 = vpop.xlane.xlu0 %200
    %v202 = vsel %vm189, %v185, 0.0
    %203 = vadd.xlane.f32.xlu0 %v202
    %v204 = vpop.xlane.xlu0 %203
    %v205 = vsel %vm189, %v186, 0.0
    %206 = vadd.xlane.f32.xlu0 %v205
    %v207 = vpop.xlane.xlu0 %206
    %v208 = vsel %vm189, %v187, 0.0
    %209 = vadd.xlane.f32.xlu0 %v208
    %v210 = vpop.xlane.xlu0 %209
    %v211 = vsel %vm189, %v188, 0.0
    %212 = vadd.xlane.f32.xlu0 %v211
    %v213 = vpop.xlane.xlu0 %212
    %v214 = vlaneseq
    %v215 = vand.u32 %v214, 127
    %216 = vset.pattern.permute.xlu0 0
    %217 = vperm.xlu0 %216, %v89
    %v218 = vpop.permute.xlu0 %217
    %vm219 = vcmp.ge.s32.totalorder %v215, %v218
    %v228 = vlaneseq
    %v229 = vshrl.u32 %v228, 7
    %v230 = vsub.s32 %v215, %v229
    %v231 = vrot.slane %v192, %v230
    %v232 = vlaneseq
    %v233 = vshrl.u32 %v232, 7
    %v234 = vsub.s32 %v215, %v233
    %v235 = vrot.slane %v195, %v234
    %v236 = vlaneseq
    %v237 = vshrl.u32 %v236, 7
    %v238 = vsub.s32 %v215, %v237
    %v239 = vrot.slane %v198, %v238
    %v240 = vlaneseq
    %v241 = vshrl.u32 %v240, 7
    %v242 = vsub.s32 %v215, %v241
    %v243 = vrot.slane %v201, %v242
    %v244 = vlaneseq
    %v245 = vshrl.u32 %v244, 7
    %v246 = vsub.s32 %v215, %v245
    %v247 = vrot.slane %v204, %v246
    %v248 = vlaneseq
    %v249 = vshrl.u32 %v248, 7
    %v250 = vsub.s32 %v215, %v249
    %v251 = vrot.slane %v207, %v250
    %v252 = vlaneseq
    %v253 = vshrl.u32 %v252, 7
    %v254 = vsub.s32 %v215, %v253
    %v255 = vrot.slane %v210, %v254
    %v256 = vlaneseq
    %v257 = vshrl.u32 %v256, 7
    %v258 = vsub.s32 %v215, %v257
    %v259 = vrot.slane %v213, %v258
    %vm260 = vcmask 1041409
    %v261 = vsel %vm260, %v235, %v231
    %vm262 = vcmask 1042434
    %v263 = vsel %vm262, %v239, %v261
    %vm264 = vcmask 1043459
    %v265 = vsel %vm264, %v243, %v263
    %vm266 = vcmask 1044484
    %v267 = vsel %vm266, %v247, %v265
    %vm268 = vcmask 1045509
    %v269 = vsel %vm268, %v251, %v267
    %vm270 = vcmask 1046534
    %v271 = vsel %vm270, %v255, %v269
    %vm272 = vcmask 1047559
    %v273 = vsel %vm272, %v259, %v271
    %v275 = vsel %vm219, -1e+09, %v273
    %vm276 = vcmask 64512
    %v277 = vsel %vm276, %v275, -inf
    %278 = vmax.xlane.f32.xlu0 %v277
    %v279 = vpop.xlane.xlu0 %278
    %v280 = vsub.f32 %v275, %v279
    %v281 = vmul.f32 %v280, 1.442695
    %v282 = vpow.pop %v281
    %v283 = vsel %vm276, %v282, 0.0
    %284 = vadd.xlane.f32.xlu0 %v283
    %v285 = vpop.xlane.xlu0 %284
    %v286 = vrcp.pop %v285
    %v287 = vmul.f32 %v282, %v286
    %v288 = vlaneseq
    %v289 = vshrl.u32 %v288, 7
    %v290 = vsub.s32 0, %v289
    %v291 = vrot.slane %v287, %v290
    %293 = vbcast.lane.b32.xlu0 %v291, 256
    %v294 = vpop.permute.xlu0 %293
    %v295 = vlaneseq
    %v296 = vshrl.u32 %v295, 7
    %v297 = vsub.s32 1, %v296
    %v298 = vrot.slane %v287, %v297
    %300 = vbcast.lane.b32.xlu0 %v298, 256
    %v301 = vpop.permute.xlu0 %300
    %v302 = vlaneseq
    %v303 = vshrl.u32 %v302, 7
    %v304 = vsub.s32 2, %v303
    %v305 = vrot.slane %v287, %v304
    %307 = vbcast.lane.b32.xlu0 %v305, 256
    %v308 = vpop.permute.xlu0 %307
    %v309 = vlaneseq
    %v310 = vshrl.u32 %v309, 7
    %v311 = vsub.s32 3, %v310
    %v312 = vrot.slane %v287, %v311
    %314 = vbcast.lane.b32.xlu0 %v312, 256
    %v315 = vpop.permute.xlu0 %314
    %v316 = vlaneseq
    %v317 = vshrl.u32 %v316, 7
    %v318 = vsub.s32 4, %v317
    %v319 = vrot.slane %v287, %v318
    %321 = vbcast.lane.b32.xlu0 %v319, 256
    %v322 = vpop.permute.xlu0 %321
    %v323 = vlaneseq
    %v324 = vshrl.u32 %v323, 7
    %v325 = vsub.s32 5, %v324
    %v326 = vrot.slane %v287, %v325
    %328 = vbcast.lane.b32.xlu0 %v326, 256
    %v329 = vpop.permute.xlu0 %328
    %v330 = vlaneseq
    %v331 = vshrl.u32 %v330, 7
    %v332 = vsub.s32 6, %v331
    %v333 = vrot.slane %v287, %v332
    %335 = vbcast.lane.b32.xlu0 %v333, 256
    %v336 = vpop.permute.xlu0 %335
    %v337 = vlaneseq
    %v338 = vshrl.u32 %v337, 7
    %v339 = vsub.s32 7, %v338
    %v340 = vrot.slane %v287, %v339
    %342 = vbcast.lane.b32.xlu0 %v340, 256
    %v343 = vpop.permute.xlu0 %342
    %v344 = vmul.f32 %v294, %v80
    %v345 = vmul.f32 %v301, %v81
    %v346 = vmul.f32 %v308, %v82
    %v347 = vmul.f32 %v315, %v83
    %v348 = vmul.f32 %v322, %v84
    %v349 = vmul.f32 %v329, %v85
    %v350 = vmul.f32 %v336, %v86
    %v351 = vmul.f32 %v343, %v87
    %v352 = vsel %vm189, %v344, 0.0
    %v353 = vrot.slane %v352, 4
    %v354 = vadd.f32 %v352, %v353
    %v355 = vrot.slane %v354, 2
    %v356 = vadd.f32 %v354, %v355
    %v357 = vrot.slane %v356, 1
    %v358 = vadd.f32 %v356, %v357
    %v359 = vsel %vm189, %v345, 0.0
    %v360 = vrot.slane %v359, 4
    %v361 = vadd.f32 %v359, %v360
    %v362 = vrot.slane %v361, 2
    %v363 = vadd.f32 %v361, %v362
    %v364 = vrot.slane %v363, 1
    %v365 = vadd.f32 %v363, %v364
    %v366 = vsel %vm189, %v346, 0.0
    %v367 = vrot.slane %v366, 4
    %v368 = vadd.f32 %v366, %v367
    %v369 = vrot.slane %v368, 2
    %v370 = vadd.f32 %v368, %v369
    %v371 = vrot.slane %v370, 1
    %v372 = vadd.f32 %v370, %v371
    %v373 = vsel %vm189, %v347, 0.0
    %v374 = vrot.slane %v373, 4
    %v375 = vadd.f32 %v373, %v374
    %v376 = vrot.slane %v375, 2
    %v377 = vadd.f32 %v375, %v376
    %v378 = vrot.slane %v377, 1
    %v379 = vadd.f32 %v377, %v378
    %v380 = vsel %vm189, %v348, 0.0
    %v381 = vrot.slane %v380, 4
    %v382 = vadd.f32 %v380, %v381
    %v383 = vrot.slane %v382, 2
    %v384 = vadd.f32 %v382, %v383
    %v385 = vrot.slane %v384, 1
    %v386 = vadd.f32 %v384, %v385
    %v387 = vsel %vm189, %v349, 0.0
    %v388 = vrot.slane %v387, 4
    %v389 = vadd.f32 %v387, %v388
    %v390 = vrot.slane %v389, 2
    %v391 = vadd.f32 %v389, %v390
    %v392 = vrot.slane %v391, 1
    %v393 = vadd.f32 %v391, %v392
    %v394 = vsel %vm189, %v350, 0.0
    %v395 = vrot.slane %v394, 4
    %v396 = vadd.f32 %v394, %v395
    %v397 = vrot.slane %v396, 2
    %v398 = vadd.f32 %v396, %v397
    %v399 = vrot.slane %v398, 1
    %v400 = vadd.f32 %v398, %v399
    %v401 = vsel %vm189, %v351, 0.0
    %v402 = vrot.slane %v401, 4
    %v403 = vadd.f32 %v401, %v402
    %v404 = vrot.slane %v403, 2
    %v405 = vadd.f32 %v403, %v404
    %v406 = vrot.slane %v405, 1
    %v407 = vadd.f32 %v405, %v406
    %v416 = vsel %vm260, %v365, %v358
    %v417 = vsel %vm262, %v372, %v416
    %v418 = vsel %vm264, %v379, %v417
    %v419 = vsel %vm266, %v386, %v418
    %v420 = vsel %vm268, %v393, %v419
    %v421 = vsel %vm270, %v400, %v420
    %v422 = vsel %vm272, %v407, %v421
    %424 = vst.msk [vmem:[#allocation10] sm:$0xff] %vm189, %v422
    %425 = vst.msk [vmem:[#allocation11] sm:$0xff] %vm276, %v287
    // Predicated region
    $region34: #{attention.1} parent=1 // pred_check
      _
    $region35: #{attention.1} parent=1 // pred_check_branch
      %427 = sbr.rel (0) target = $region37
    $region36: #{attention.1} parent=1 // pred_region
      %s429 = ssub.s32 128, 128
      %430 = vsyncadd [#allocation4], %s429
      %s432 = sshll.u32 [#allocation10], 4
      %s433 = int_to_ptr.vmem [resolvable:$true] %s432
      %435 = dma.vmem_to_hbm [thread:$0]  %s433, 128, %s4, [#allocation4]
    $region37: #{attention.1} parent=1 // pred_fallthru
      _
    // Predicated region
    $region38: #{attention.1} parent=1 // pred_check
      _
    $region39: #{attention.1} parent=1 // pred_check_branch
      %437 = sbr.rel (0) target = $region41
    $region40: #{attention.1} parent=1 // pred_region
      %s439 = ssub.s32 128, 128
      %440 = vsyncadd [#allocation12], %s439
      %s442 = sshll.u32 [#allocation11], 4
      %s443 = int_to_ptr.vmem [resolvable:$true] %s442
      %445 = dma.vmem_to_hbm [thread:$0]  %s443, 128, %s5, [#allocation12]
    $region41: #{attention.1} parent=1 // pred_fallthru
      _
    // Predicated region
    $region42: #{attention.1} parent=1 // pred_check
      _
    $region43: #{attention.1} parent=1 // pred_check_branch
      %447 = sbr.rel (0) target = $region45
    $region44: #{attention.1} parent=1 // pred_region
      %448 = dma.done [#allocation4], 128
    $region45: #{attention.1} parent=1 // pred_fallthru
      _
    // Predicated region
    $region46: #{attention.1} parent=1 // pred_check
      _
    $region47: #{attention.1} parent=1 // pred_check_branch
      %450 = sbr.rel (0) target = $region49
    $region48: #{attention.1} parent=1 // pred_region
      %451 = dma.done [#allocation12], 128
    $region49: #{attention.1} parent=1 // pred_fallthru
      _
    %452 = vsyncpa [#allocation3], 1
    %453 = vsyncpa [#allocation6], 1
    %454 = vsyncpa [#allocation9], 1
    %455 = vsyncpa [#allocation4], 1
    %456 = vsyncpa [#allocation12], 1

</llo_original>
